<compile_context>
chip_gen: v7x
topology: tpu7x:2x2x1
jax: 0.10.0
libtpu: 0.0.40
codegen_flags: <defaults>
</compile_context>

<pallas_src>
import functools

import jax
import jax.numpy as jnp
from jax.experimental import pallas as pl
from jax.experimental.pallas import tpu as pltpu


H = 64  # hidden / output width of the PyTorch module


def _round_up(x: int, m: int) -> int:
    return ((x + m - 1) // m) * m


def _cdiv(a: int, b: int) -> int:
    return (a + b - 1) // b


def _mlp_kernel(x_ref, w1_ref, b1_ref, w2_ref, b2_ref, o_ref):
    """One batch tile: tanh(tanh(x @ W1 + b1) @ W2 + b2), all widths = 64."""
    x = x_ref[...]                                  # (TB, n_in) f32
    tb = x_ref.shape[0]
    n_in = x_ref.shape[1]

    # ---- Layer 1 on the VPU: K = n_in is tiny, a padded MXU pass would be
    # ~96% wasted.  Static-unrolled broadcast multiply-adds (outer products).
    h = jnp.broadcast_to(b1_ref[...], (tb, H))      # hoisted bias broadcast
    for k in range(n_in):                           # n_in is small and static
        h = h + x[:, k:k + 1] * w1_ref[k:k + 1, :]
    h = jnp.tanh(h)                                 # (TB, 64) f32

    # ---- Layer 2 on the MXU: bf16 operands (K = N = 64), f32 accumulation.
    y = jnp.dot(h.astype(jnp.bfloat16), w2_ref[...],
                preferred_element_type=jnp.float32)
    o_ref[...] = jnp.tanh(y + b2_ref[...])          # bias add / tanh in f32


def prepare_params(w1, b1, w2, b2):
    """Store params in kernel layout: (in, out) matrices, W2 in bf16 for MXU.

    w1: (n_in, 64), b1: (1, 64), w2: (64, 64), b2: (1, 64)  -- x @ W + b,
    equivalent to PyTorch's x @ W.T with its (out, in) storage.
    """
    w1 = jnp.asarray(w1, jnp.float32)
    b1 = jnp.asarray(b1, jnp.float32).reshape(1, -1)
    w2 = jnp.asarray(w2, jnp.float32).astype(jnp.bfloat16)
    b2 = jnp.asarray(b2, jnp.float32).reshape(1, -1)
    return w1, b1, w2, b2


@functools.partial(jax.jit, static_argnames=("block_batch",))
def net_forward(obs, params, state=None, block_batch=4096):
    """Mirrors Net.forward: returns (logits, state). `params` from prepare_params."""
    obs = jnp.asarray(obs, dtype=jnp.float32)
    w1, b1, w2, b2 = params
    B, n_in = obs.shape

    # Batch tile: multiple of 8 sublanes, capped by the batch, and capped at
    # ~half the batch so v7x's two TensorCores both get work when B is large.
    tb = min(_round_up(block_batch, 8),
             _round_up(B, 8),
             max(8, _round_up(_cdiv(B, 2), 8)))
    grid = (_cdiv(B, tb),)   # Pallas masks the partial last block; no padding.

    cost = pl.CostEstimate(
        flops=2 * B * (n_in * H + H * H),
        transcendentals=2 * B * H,
        bytes_accessed=4 * B * (n_in + H)
        + 4 * (n_in * H + 2 * H) + 2 * H * H,
    )

    logits = pl.pallas_call(
        _mlp_kernel,
        out_shape=jax.ShapeDtypeStruct((B, H), jnp.float32),
        grid=grid,
        in_specs=[
            pl.BlockSpec((tb, n_in), lambda i: (i, 0)),   # obs: tiled over batch
            pl.BlockSpec((n_in, H), lambda i: (0, 0)),    # W1: resident
            pl.BlockSpec((1, H), lambda i: (0, 0)),       # b1: resident
            pl.BlockSpec((H, H), lambda i: (0, 0)),       # W2 (bf16): resident
            pl.BlockSpec((1, H), lambda i: (0, 0)),       # b2: resident
        ],
        out_specs=pl.BlockSpec((tb, H), lambda i: (i, 0)),  # exact (B, 64) output
        compiler_params=pltpu.CompilerParams(
            dimension_semantics=("parallel",)),
        cost_estimate=cost,
    )(obs, w1, b1, w2, b2)

    return logits, state


def init_raw_params(key, n_input, hidden=H):
    """PyTorch nn.Linear-style init: U(-1/sqrt(fan_in), +1/sqrt(fan_in))."""
    k1, k2, k3, k4 = jax.random.split(key, 4)
    lim1 = 1.0 / jnp.sqrt(jnp.float32(n_input))
    lim2 = 1.0 / jnp.sqrt(jnp.float32(hidden))
    w1 = jax.random.uniform(k1, (n_input, hidden), jnp.float32, -lim1, lim1)
    b1 = jax.random.uniform(k2, (1, hidden), jnp.float32, -lim1, lim1)
    w2 = jax.random.uniform(k3, (hidden, hidden), jnp.float32, -lim2, lim2)
    b2 = jax.random.uniform(k4, (1, hidden), jnp.float32, -lim2, lim2)
    return w1, b1, w2, b2


def _reference(obs, raw):
    """Pure-JAX reference with the same bf16 quantization of the 2nd matmul."""
    w1, b1, w2, b2 = raw
    h = jnp.tanh(obs @ w1 + b1)
    y = jnp.dot(h.astype(jnp.bfloat16), w2.astype(jnp.bfloat16),
                preferred_element_type=jnp.float32)
    return jnp.tanh(y + b2)


if __name__ == "__main__":
    key = jax.random.PRNGKey(0)
    k_obs, k_par, k_obs2 = jax.random.split(key, 3)

    n_input = 4   # CartPole observation dim
    raw = init_raw_params(k_par, n_input, H)
    params = prepare_params(*raw)

    # --- small batch (matches the cartpole example) ---
    obs_small = jax.random.normal(k_obs, (8, n_input), dtype=jnp.float32)
    logits_small, state = net_forward(obs_small, params, state=None)
    jax.block_until_ready(logits_small)
    assert logits_small.shape == (8, H)
    assert state is None
    assert jnp.allclose(logits_small, _reference(obs_small, raw),
                        atol=2e-3, rtol=2e-3)

    # --- larger, non-multiple batch: exercises multi-step grid + the masked
    #     partial last block (no wrapper-side padding or slicing anywhere) ---
    obs_big = jax.random.normal(k_obs2, (1000, n_input), dtype=jnp.float32)
    logits_big, _ = net_forward(obs_big, params, block_batch=256)
    jax.block_until_ready(logits_big)
    assert logits_big.shape == (1000, H)
    assert jnp.allclose(logits_big, _reference(obs_big, raw),
                        atol=2e-3, rtol=2e-3)

    # loose check against exact f32 PyTorch semantics (kernel uses bf16 MXU
    # operands for layer 2 -- documented tolerance contract)
    w1, b1, w2, b2 = raw
    ref_f32 = jnp.tanh(jnp.tanh(obs_small @ w1 + b1) @ w2 + b2)
    assert jnp.allclose(logits_small, ref_f32, atol=5e-2)

    print("KERNEL_OK")
</pallas_src>

<mosaic_0001>
module attributes {stable_mosaic.version = 11 : i64} {
  func.func @_mlp_kernel(%arg0: i32, %arg1: memref<8x4xf32, #tpu.memory_space<vmem>>, %arg2: memref<4x64xf32, #tpu.memory_space<vmem>>, %arg3: memref<1x64xf32, #tpu.memory_space<vmem>>, %arg4: memref<64x64xbf16, #tpu.memory_space<vmem>>, %arg5: memref<1x64xf32, #tpu.memory_space<vmem>>, %arg6: memref<8x64xf32, #tpu.memory_space<vmem>>) attributes {dimension_semantics = [#tpu.dimension_semantics<parallel>], iteration_bounds = array<i64: 1>, scalar_prefetch = 0 : i64, scratch_operands = 0 : i64, tpu.core_type = #tpu.core_type<tc>, window_params = [{transform_indices = @transform_0, window_bounds = array<i64: 8, 4>}, {pipeline_mode = #tpu.pipeline_mode<synchronous>, transform_indices = @transform_1, window_bounds = array<i64: 4, 64>}, {pipeline_mode = #tpu.pipeline_mode<synchronous>, transform_indices = @transform_2, window_bounds = array<i64: 1, 64>}, {pipeline_mode = #tpu.pipeline_mode<synchronous>, transform_indices = @transform_3, window_bounds = array<i64: 64, 64>}, {pipeline_mode = #tpu.pipeline_mode<synchronous>, transform_indices = @transform_4, window_bounds = array<i64: 1, 64>}, {transform_indices = @transform_5, window_bounds = array<i64: 8, 64>}]} {
    %c0 = arith.constant 0 : index
    %c0_0 = arith.constant 0 : index
    %0 = vector.load %arg1[%c0, %c0_0] : memref<8x4xf32, #tpu.memory_space<vmem>>, vector<8x4xf32>
    %c0_1 = arith.constant 0 : index
    %c0_2 = arith.constant 0 : index
    %1 = vector.load %arg3[%c0_1, %c0_2] : memref<1x64xf32, #tpu.memory_space<vmem>>, vector<1x64xf32>
    %2 = vector.shape_cast %1 : vector<1x64xf32> to vector<1x64xf32>
    %3 = vector.broadcast %2 : vector<1x64xf32> to vector<8x64xf32>
    %4 = vector.extract_strided_slice %0 {offsets = [0, 0], sizes = [8, 1], strides = [1, 1]} : vector<8x4xf32> to vector<8x1xf32>
    %c0_3 = arith.constant 0 : index
    %c0_4 = arith.constant 0 : index
    %5 = vector.load %arg2[%c0_3, %c0_4] : memref<4x64xf32, #tpu.memory_space<vmem>>, vector<1x64xf32>
    %6 = vector.broadcast %4 : vector<8x1xf32> to vector<8x64xf32>
    %7 = vector.broadcast %5 : vector<1x64xf32> to vector<8x64xf32>
    %8 = arith.mulf %6, %7 : vector<8x64xf32>
    %9 = arith.addf %3, %8 : vector<8x64xf32>
    %10 = vector.extract_strided_slice %0 {offsets = [0, 1], sizes = [8, 1], strides = [1, 1]} : vector<8x4xf32> to vector<8x1xf32>
    %c1 = arith.constant 1 : index
    %c0_5 = arith.constant 0 : index
    %11 = vector.load %arg2[%c1, %c0_5] : memref<4x64xf32, #tpu.memory_space<vmem>>, vector<1x64xf32>
    %12 = vector.broadcast %10 : vector<8x1xf32> to vector<8x64xf32>
    %13 = vector.broadcast %11 : vector<1x64xf32> to vector<8x64xf32>
    %14 = arith.mulf %12, %13 : vector<8x64xf32>
    %15 = arith.addf %9, %14 : vector<8x64xf32>
    %16 = vector.extract_strided_slice %0 {offsets = [0, 2], sizes = [8, 1], strides = [1, 1]} : vector<8x4xf32> to vector<8x1xf32>
    %c2 = arith.constant 2 : index
    %c0_6 = arith.constant 0 : index
    %17 = vector.load %arg2[%c2, %c0_6] : memref<4x64xf32, #tpu.memory_space<vmem>>, vector<1x64xf32>
    %18 = vector.broadcast %16 : vector<8x1xf32> to vector<8x64xf32>
    %19 = vector.broadcast %17 : vector<1x64xf32> to vector<8x64xf32>
    %20 = arith.mulf %18, %19 : vector<8x64xf32>
    %21 = arith.addf %15, %20 : vector<8x64xf32>
    %22 = vector.extract_strided_slice %0 {offsets = [0, 3], sizes = [8, 1], strides = [1, 1]} : vector<8x4xf32> to vector<8x1xf32>
    %c3 = arith.constant 3 : index
    %c0_7 = arith.constant 0 : index
    %23 = vector.load %arg2[%c3, %c0_7] : memref<4x64xf32, #tpu.memory_space<vmem>>, vector<1x64xf32>
    %24 = vector.broadcast %22 : vector<8x1xf32> to vector<8x64xf32>
    %25 = vector.broadcast %23 : vector<1x64xf32> to vector<8x64xf32>
    %26 = arith.mulf %24, %25 : vector<8x64xf32>
    %27 = arith.addf %21, %26 : vector<8x64xf32>
    %28 = math.tanh %27 : vector<8x64xf32>
    %29 = arith.truncf %28 : vector<8x64xf32> to vector<8x64xbf16>
    %c0_8 = arith.constant 0 : index
    %c0_9 = arith.constant 0 : index
    %30 = vector.load %arg4[%c0_8, %c0_9] : memref<64x64xbf16, #tpu.memory_space<vmem>>, vector<64x64xbf16>
    %cst = arith.constant dense<0.000000e+00> : vector<8x64xf32>
    %31 = tpu.matmul %29, %30, %cst {dimension_numbers = #tpu.dot_dimension_numbers<[1], [0], [0], [1], [0, 0, 1, 1], [], []>} : vector<8x64xbf16>, vector<64x64xbf16>, vector<8x64xf32> -> vector<8x64xf32>
    %c0_10 = arith.constant 0 : index
    %c0_11 = arith.constant 0 : index
    %32 = vector.load %arg5[%c0_10, %c0_11] : memref<1x64xf32, #tpu.memory_space<vmem>>, vector<1x64xf32>
    %33 = vector.broadcast %32 : vector<1x64xf32> to vector<8x64xf32>
    %34 = arith.addf %31, %33 : vector<8x64xf32>
    %35 = math.tanh %34 : vector<8x64xf32>
    %c0_12 = arith.constant 0 : index
    %c0_13 = arith.constant 0 : index
    %36 = vector.load %arg6[%c0_12, %c0_13] : memref<8x64xf32, #tpu.memory_space<vmem>>, vector<8x64xf32>
    tpu.vector_store %arg6[%c0_12, %c0_13], %35 {strides = array<i32>} : memref<8x64xf32, #tpu.memory_space<vmem>>, vector<8x64xf32>,
    return
  }
  func.func @transform_0(%arg0: i32) -> (i32, i32) {
    %c0_i32 = arith.constant 0 : i32
    %c0_i32_0 = arith.constant 0 : i32
    return %arg0, %c0_i32 : i32, i32
  }
  func.func @transform_1(%arg0: i32) -> (i32, i32) {
    %c0_i32 = arith.constant 0 : i32
    %c0_i32_0 = arith.constant 0 : i32
    %c0_i32_1 = arith.constant 0 : i32
    return %c0_i32, %c0_i32_0 : i32, i32
  }
  func.func @transform_2(%arg0: i32) -> (i32, i32) {
    %c0_i32 = arith.constant 0 : i32
    %c0_i32_0 = arith.constant 0 : i32
    %c0_i32_1 = arith.constant 0 : i32
    return %c0_i32, %c0_i32_0 : i32, i32
  }
  func.func @transform_3(%arg0: i32) -> (i32, i32) {
    %c0_i32 = arith.constant 0 : i32
    %c0_i32_0 = arith.constant 0 : i32
    %c0_i32_1 = arith.constant 0 : i32
    return %c0_i32, %c0_i32_0 : i32, i32
  }
  func.func @transform_4(%arg0: i32) -> (i32, i32) {
    %c0_i32 = arith.constant 0 : i32
    %c0_i32_0 = arith.constant 0 : i32
    %c0_i32_1 = arith.constant 0 : i32
    return %c0_i32, %c0_i32_0 : i32, i32
  }
  func.func @transform_5(%arg0: i32) -> (i32, i32) {
    %c0_i32 = arith.constant 0 : i32
    %c0_i32_0 = arith.constant 0 : i32
    return %arg0, %c0_i32 : i32, i32
  }
}

</mosaic_0001>

<llo_original>
// kernel: net_forward.1
$region0: #{net_forward.1}
  #allocation0 [shape = 'u32[]', space=smem, size = 0x4, offset = 0x4, fixed_abs, tag = 'smem constant byte address 0x4 - core index']
  #allocation1 [shape = 'u32[144,128]{1,0:T(1,128)}', space=vmem, size = 0x12000, scoped, tag = 'internal scratch']
  %s0 = inlined_call_operand.vmem [shape: f32[8,4], index: 0, kind: input, shape index: {}]
  %s1 = inlined_call_operand.vmem [shape: f32[4,64], index: 1, kind: input, shape index: {}]
  %s2 = inlined_call_operand.vmem [shape: f32[1,64], index: 2, kind: input, shape index: {}]
  %s3 = inlined_call_operand.hbm [shape: bf16[64,64], index: 3, kind: input, shape index: {}]
  %s4 = inlined_call_operand.vmem [shape: f32[1,64], index: 4, kind: input, shape index: {}]
  %s5 = inlined_call_operand.hbm [shape: f32[8,64], index: 5, kind: output, shape index: {}]
  %s6 = sld [smem:[#allocation0]]
  $region34: #{net_forward.1} parent=0
    _
  %s8 = ssub.s32 1, %s6
  %s9 = scalar_select 0, %s8, %s6
  $region1: #{net_forward.1} parent=0
    #allocation2 [shape = 'u8[16384]{0}', space=vmem, size = 0x4000, scoped, tag = 'input window, operand 3, single buffered']
    #allocation3 [shape = 's32[1]{0}', space=sflag, size = 0x4, scoped, tag = 'scoped memory for net_forward.1']
    #allocation4 [shape = 's32[1]{0}', space=sflag, size = 0x4, scoped, tag = 'scoped memory for net_forward.1']
    #allocation5 [shape = 'u8[4096]{0}', space=vmem, size = 0x1000, scoped, tag = 'output window, operand 0, single buffered']
    %10 = vsyncpa [#allocation3], 0
    %11 = vsyncpa [#allocation4], 0
    // Predicated region
    $region2: #{net_forward.1} parent=1 // pred_check
      _
    $region3: #{net_forward.1} parent=1 // pred_check_branch
      %13 = sbr.rel (0) target = $region5
    $region4: #{net_forward.1} parent=1 // pred_region
      _
    $region5: #{net_forward.1} parent=1 // pred_fallthru
      _
    // Predicated region
    $region6: #{net_forward.1} parent=1 // pred_check
      _
    $region7: #{net_forward.1} parent=1 // pred_check_branch
      %15 = sbr.rel (0) target = $region9
    $region8: #{net_forward.1} parent=1 // pred_region
      _
    $region9: #{net_forward.1} parent=1 // pred_fallthru
      _
    // Predicated region
    $region10: #{net_forward.1} parent=1 // pred_check
      _
    $region11: #{net_forward.1} parent=1 // pred_check_branch
      %17 = sbr.rel (0) target = $region13
    $region12: #{net_forward.1} parent=1 // pred_region
      _
    $region13: #{net_forward.1} parent=1 // pred_fallthru
      _
    // Predicated region
    $region14: #{net_forward.1} parent=1 // pred_check
      _
    $region15: #{net_forward.1} parent=1 // pred_check_branch
      %19 = sbr.rel (0) target = $region17
    $region16: #{net_forward.1} parent=1 // pred_region
      %s21 = ssub.s32 512, 512
      %22 = vsyncadd [#allocation3], %s21
      %s23 = sshll.u32 [#allocation2], 4
      %s24 = int_to_ptr.vmem [resolvable:$true] %s23
      %29 = dma.hbm_to_vmem [thread:$0]  %s3, 512, %s24, [#allocation3], 64, 64, 4
    $region17: #{net_forward.1} parent=1 // pred_fallthru
      _
    // Predicated region
    $region18: #{net_forward.1} parent=1 // pred_check
      _
    $region19: #{net_forward.1} parent=1 // pred_check_branch
      %31 = sbr.rel (0) target = $region21
    $region20: #{net_forward.1} parent=1 // pred_region
      _
    $region21: #{net_forward.1} parent=1 // pred_fallthru
      _
    // Predicated region
    $region22: #{net_forward.1} parent=1 // pred_check
      _
    $region23: #{net_forward.1} parent=1 // pred_check_branch
      %33 = sbr.rel (0) target = $region25
    $region24: #{net_forward.1} parent=1 // pred_region
      %34 = dma.done [#allocation3], 512
    $region25: #{net_forward.1} parent=1 // pred_fallthru
      _
    %v36 = vld [vmem:[%s0] sm:$0xff]
    %v37 = vld [vmem:[%s2] sm:$0x1]
    %v39 = vlaneseq
    %v40 = vshrl.u32 %v39, 7
    %v41 = vsub.s32 0, %v40
    %v42 = vrot.slane %v37, %v41
    %v44 = vld [vmem:[%s1] sm:$0x1]
    %46 = vset.pattern.permute.xlu0 0
    %47 = vperm.xlu0 %46, %v36
    %v48 = vpop.permute.xlu0 %47
    %v50 = vlaneseq
    %v51 = vshrl.u32 %v50, 7
    %v52 = vsub.s32 0, %v51
    %v53 = vrot.slane %v44, %v52
    %v54 = vmul.f32 %v48, %v53
    %v55 = vadd.f32 %v42, %v54
    %v56 = vld [vmem:[%s1 + $0x1] sm:$0x1]
    %57 = vset.pattern.permute.xlu0 1
    %58 = vperm.xlu0 %57, %v36
    %v59 = vpop.permute.xlu0 %58
    %v61 = vlaneseq
    %v62 = vshrl.u32 %v61, 7
    %v63 = vsub.s32 0, %v62
    %v64 = vrot.slane %v56, %v63
    %v65 = vmul.f32 %v59, %v64
    %v66 = vadd.f32 %v55, %v65
    %v67 = vld [vmem:[%s1 + $0x2] sm:$0x1]
    %68 = vset.pattern.permute.xlu0 2
    %69 = vperm.xlu0 %68, %v36
    %v70 = vpop.permute.xlu0 %69
    %v72 = vlaneseq
    %v73 = vshrl.u32 %v72, 7
    %v74 = vsub.s32 0, %v73
    %v75 = vrot.slane %v67, %v74
    %v76 = vmul.f32 %v70, %v75
    %v77 = vadd.f32 %v66, %v76
    %v78 = vld [vmem:[%s1 + $0x3] sm:$0x1]
    %79 = vset.pattern.permute.xlu0 3
    %80 = vperm.xlu0 %79, %v36
    %v81 = vpop.permute.xlu0 %80
    %v83 = vlaneseq
    %v84 = vshrl.u32 %v83, 7
    %v85 = vsub.s32 0, %v84
    %v86 = vrot.slane %v78, %v85
    %v87 = vmul.f32 %v81, %v86
    %v88 = vadd.f32 %v77, %v87
    %v89 = vtanh.pop %v88
    %v90 = vpack.c.bf16 %v89, %v89
    %v91 = vld [vmem:[#allocation2] sm:$0xf]
    %v92 = vld [vmem:[#allocation2 + $0x4] sm:$0xf]
    %v93 = vld [vmem:[#allocation2 + $0x8] sm:$0xf]
    %v94 = vld [vmem:[#allocation2 + $0xc] sm:$0xf]
    %v95 = vld [vmem:[#allocation2 + $0x10] sm:$0xf]
    %v96 = vld [vmem:[#allocation2 + $0x14] sm:$0xf]
    %v97 = vld [vmem:[#allocation2 + $0x18] sm:$0xf]
    %v98 = vld [vmem:[#allocation2 + $0x1c] sm:$0xf]
    %v99 = vld [vmem:[%s4] sm:$0x1]
    %v101 = vlaneseq
    %v102 = vshrl.u32 %v101, 7
    %v103 = vsub.s32 0, %v102
    %v104 = vrot.slane %v99, %v103
    %v114 = vunpack.c.l.b16 %v91
    %v115 = vunpack.c.l.b16 %v92
    %v116 = vunpack.c.l.b16 %v93
    %v117 = vunpack.c.l.b16 %v94
    %v118 = vunpack.c.l.b16 %v95
    %v119 = vunpack.c.l.b16 %v96
    %v120 = vunpack.c.l.b16 %v97
    %v121 = vunpack.c.l.b16 %v98
    %v122 = vpack.c.b16 %v115, %v114
    %v123 = vpack.c.b16 %v117, %v116
    %v124 = vpack.c.b16 %v119, %v118
    %v125 = vpack.c.b16 %v121, %v120
    %vm130 = vcmask 523264
    %v132 = vsel %vm130, %v90, 0
    %134 = vmatprep.subr.bf16.mxu0 0
    %135 = vmatpush1.bf16.msra.mxu0 %v122
    %136 = vmatprep.subr.bf16.mxu0 0
    %137 = vmatpush1.bf16.msra.mxu0 %v123
    %138 = vmatprep.subr.bf16.mxu0 0
    %139 = vmatpush1.bf16.msra.mxu0 %v124
    %140 = vmatprep.subr.bf16.mxu0 0
    %141 = vmatpush1.bf16.msra.mxu0 %v125
    %142 = vmatprep.subr.bf16.mxu0 0
    %143 = vmatpush1.bf16.msra.mxu0 0
    %144 = vmatprep.subr.bf16.mxu0 0
    %145 = vmatpush1.bf16.msra.mxu0 0
    %146 = vmatprep.subr.bf16.mxu0 0
    %147 = vmatpush1.bf16.msra.mxu0 0
    %148 = vmatprep.subr.bf16.mxu0 0
    %149 = vmatpush1.bf16.msra.mxu0 0
    %150 = vmatprep.subr.bf16.mxu0 0
    %151 = vmatpush1.bf16.msra.mxu0 0
    %152 = vmatprep.subr.bf16.mxu0 0
    %153 = vmatpush1.bf16.msra.mxu0 0
    %154 = vmatprep.subr.bf16.mxu0 0
    %155 = vmatpush1.bf16.msra.mxu0 0
    %156 = vmatprep.subr.bf16.mxu0 0
    %157 = vmatpush1.bf16.msra.mxu0 0
    %158 = vmatprep.subr.bf16.mxu0 0
    %159 = vmatpush1.bf16.msra.mxu0 0
    %160 = vmatprep.subr.bf16.mxu0 0
    %161 = vmatpush1.bf16.msra.mxu0 0
    %162 = vmatprep.subr.bf16.mxu0 0
    %163 = vmatpush1.bf16.msra.mxu0 0
    %164 = vmatprep.subr.bf16.mxu0 0
    %165 = vmatpush1.bf16.msra.mxu0 0
    %166 = vmatprep.mubr.bf16.mxu0 0
    %167 = vmatmul.mubr.bf16.gmra.mrb[0].mxu0 %v132
    %v168 = vpop.f32.mrb[0].mxu0
    %v169 = vadd.f32 %v104, %v168
    %v170 = vpop.f32.mrb[0].mxu0
    %v171 = vpop.f32.mrb[0].mxu0
    %v172 = vpop.f32.mrb[0].mxu0
    %173 = vdwg.mxu0
    %v174 = vtanh.pop %v169
    %175 = vst.msk [vmem:[#allocation5] sm:$0xff] %vm130, %v174
    // Predicated region
    $region26: #{net_forward.1} parent=1 // pred_check
      _
    $region27: #{net_forward.1} parent=1 // pred_check_branch
      %177 = sbr.rel (0) target = $region29
    $region28: #{net_forward.1} parent=1 // pred_region
      %s179 = ssub.s32 128, 128
      %180 = vsyncadd [#allocation4], %s179
      %s182 = sshll.u32 [#allocation5], 4
      %s183 = int_to_ptr.vmem [resolvable:$true] %s182
      %185 = dma.vmem_to_hbm [thread:$0]  %s183, 128, %s5, [#allocation4]
    $region29: #{net_forward.1} parent=1 // pred_fallthru
      _
    // Predicated region
    $region30: #{net_forward.1} parent=1 // pred_check
      _
    $region31: #{net_forward.1} parent=1 // pred_check_branch
      %187 = sbr.rel (0) target = $region33
    $region32: #{net_forward.1} parent=1 // pred_region
      %188 = dma.done [#allocation4], 128
    $region33: #{net_forward.1} parent=1 // pred_fallthru
      _
    %189 = vsyncpa [#allocation3], 1
    %190 = vsyncpa [#allocation4], 1

</llo_original>
